<compile_context>
chip_gen: v6e
topology: v6e:2x2x1
jax: 0.10.0
libtpu: 0.0.40
codegen_flags: <defaults>
</compile_context>

<pallas_src>
import jax
import jax.numpy as jnp
from jax.experimental import pallas as pl
from jax.experimental.pallas import tpu as pltpu


def _policy_head_kernel(feat_ref, w_ref, b_ref, stats_ref):
    """Fused policy head for one batch tile.

    feat_ref  : [TB, H]   bf16  features tile (double-buffered across the grid)
    w_ref     : [H, A+1]  bf16  fused [actor | critic] weight, resident across the grid
    b_ref     : [1, A+1]  f32   fused bias
    stats_ref : [TB, 8]   f32   lane 0=value, 1=chosen log-prob, 2=entropy, 3=action (as f32)
    """
    feats = feat_ref[...]                                            # [TB, H] bf16

    # Single MXU pass for both heads: [TB, H] @ [H, A+1], f32 accumulation.
    out = jnp.dot(feats, w_ref[...],
                  preferred_element_type=jnp.float32) + b_ref[...]   # [TB, A+1] f32
    A = out.shape[-1] - 1
    logits = out[:, :A]                                              # [TB, A]
    value = out[:, A:A + 1]                                          # [TB, 1]

    # Numerically stable softmax stats with a single full-width exp.
    m = jnp.max(logits, axis=-1, keepdims=True)                      # [TB, 1]
    z = logits - m                                                   # [TB, A]
    e = jnp.exp(z)                                                   # [TB, A] (only full-width exp)
    se = jnp.sum(e, axis=-1, keepdims=True)                          # [TB, 1]
    lse = jnp.log(se)                                                # [TB, 1]

    # deterministic action = distribution.mode() == first argmax index of logits.
    col = jax.lax.broadcasted_iota(jnp.int32, logits.shape, 1)       # [TB, A]
    action = jnp.min(jnp.where(logits == m, col, A),
                     axis=-1, keepdims=True)                         # [TB, 1] int32

    # chosen log-prob = z[action] - lse   (gather via masked sum).
    z_at_action = jnp.sum(jnp.where(col == action, z, 0.0),
                          axis=-1, keepdims=True)                    # [TB, 1]
    chosen_logp = z_at_action - lse                                  # [TB, 1]

    # entropy = -sum(p*logp) = lse - sum(e*z)/se   (one exact [TB,1] divide).
    entropy = lse - jnp.sum(e * z, axis=-1, keepdims=True) / se      # [TB, 1]

    # Actions are small indices (< 2^24) -> exact when stored as f32.
    action_f = action.astype(jnp.float32)                            # [TB, 1]

    # Pack the four per-row scalars into one lane-packed output block.
    scol = jax.lax.broadcasted_iota(jnp.int32, stats_ref.shape, 1)   # [TB, 8]
    stats_ref[...] = jnp.where(scol == 0, value,
                     jnp.where(scol == 1, chosen_logp,
                     jnp.where(scol == 2, entropy,
                     jnp.where(scol == 3, action_f, 0.0))))


def _round8(x):
    return ((x + 7) // 8) * 8


def policy_traj_uncertain_act(features, params):
    """Runs the PolicyTrajUncertain head on `features` ([B, H]).

    params = (w_fused [H, A+1], b_fused [1, A+1]) — actor columns 0..A-1, critic column A.
    Returns (value [B,1] f32, action [B,1] i32, action_log_probs [B,1] f32, entropy_mean []).
    """
    w, b = params
    B, H = features.shape
    Ap1 = w.shape[1]

    # HBM stream in bf16; matmul accumulates f32, elementwise math stays f32.
    feats16 = features.astype(jnp.bfloat16)
    w16 = w.astype(jnp.bfloat16)
    b32 = b.astype(jnp.float32)

    # Byte-based batch-tile sizing.  Per row we pay:
    #   2x double-buffered bf16 feats (2*H*2 bytes)
    #   ~n_inter full-width f32 intermediates padded to 128 lanes ([TB, pad128(A+1)])
    #   2x double-buffered packed stats output (2*8*4 bytes)
    # Budget kept well under v7x's 64 MiB physical VMEM (32 MiB scoped default).
    pad_a = ((Ap1 + 127) // 128) * 128
    n_inter = 8
    per_row = 2 * H * 2 + n_inter * pad_a * 4 + 2 * 8 * 4
    resident = 2 * (H * pad_a * 2 + pad_a * 4)          # weight + bias (double-buffered, padded)
    vmem_budget = 28 * 1024 * 1024
    tb = max(8, ((max(vmem_budget - resident, 0) // per_row) // 8) * 8)
    tb = min(tb, _round8(B))
    if B > 16:
        # Keep >= 2 grid steps so the "parallel" batch axis shards across v7x's two TCs.
        tb = min(tb, _round8(pl.cdiv(B, 2)))
    tb = max(8, tb)
    grid = (pl.cdiv(B, tb),)

    stats = pl.pallas_call(
        _policy_head_kernel,
        out_shape=jax.ShapeDtypeStruct((B, 8), jnp.float32),
        grid_spec=pltpu.PrefetchScalarGridSpec(
            num_scalar_prefetch=0,
            grid=grid,
            in_specs=[
                pl.BlockSpec((tb, H), lambda i: (i, 0)),     # streamed batch tiles (bf16)
                pl.BlockSpec((H, Ap1), lambda i: (0, 0)),    # resident fused weight
                pl.BlockSpec((1, Ap1), lambda i: (0, 0)),    # resident fused bias
            ],
            out_specs=pl.BlockSpec((tb, 8), lambda i: (i, 0)),
        ),
        compiler_params=pltpu.CompilerParams(
            dimension_semantics=("parallel",),               # batch tiles -> both TCs on v7x
            vmem_limit_bytes=48 * 1024 * 1024,
        ),
    )(feats16, w16, b32)

    value = stats[:, 0:1]
    action_log_probs = stats[:, 1:2]
    entropy_mean = jnp.mean(stats[:, 2])
    action = stats[:, 3:4].astype(jnp.int32)
    return value, action, action_log_probs, entropy_mean


def _orthogonal(key, rows, cols, gain):
    # Deterministic orthogonal init (matches nn.init.orthogonal_ semantics).
    n, m = (rows, cols) if rows >= cols else (cols, rows)
    a = jax.random.normal(key, (n, m), jnp.float32)
    q, r = jnp.linalg.qr(a)
    q = q * jnp.sign(jnp.diagonal(r))[None, :]
    w = q if rows >= cols else q.T
    return gain * w[:rows, :cols]


def init_params(key, hidden, dim_actions):
    k1, k2 = jax.random.split(key)
    # CategoricalNet: Linear(hidden, dim_actions), orthogonal(gain=0.01), bias 0.
    wa = _orthogonal(k1, dim_actions, hidden, gain=0.01).T            # [H, A]
    # CriticHead: Linear(hidden, 1), orthogonal(gain=1), bias 0.
    wc = _orthogonal(k2, 1, hidden, gain=1.0).T                       # [H, 1]
    # Fused layout so the kernel does a single [H, A+1] matmul (critic = last column).
    w = jnp.concatenate([wa, wc], axis=1)                             # [H, A+1]
    b = jnp.zeros((1, dim_actions + 1), jnp.float32)
    return w, b


if __name__ == "__main__":
    B, HIDDEN, DIM_ACTIONS = 2, 32, 4

    key = jax.random.PRNGKey(0)
    k_feat, k_param = jax.random.split(key)
    features = jax.random.normal(k_feat, (B, HIDDEN), jnp.float32)
    params = init_params(k_param, HIDDEN, DIM_ACTIONS)

    value, action, action_log_probs, entropy_mean = jax.block_until_ready(
        policy_traj_uncertain_act(features, params)
    )

    # Pure-JAX reference of the same head, using the same bf16-cast inputs the kernel sees.
    w, b = params
    f_ref = features.astype(jnp.bfloat16).astype(jnp.float32)
    w_ref = w.astype(jnp.bfloat16).astype(jnp.float32)
    wa, wc = w_ref[:, :DIM_ACTIONS], w_ref[:, DIM_ACTIONS:]
    ba, bc = b[:, :DIM_ACTIONS], b[:, DIM_ACTIONS:]
    logits_ref = f_ref @ wa + ba
    value_ref = f_ref @ wc + bc
    logp_ref = jax.nn.log_softmax(logits_ref, axis=-1)
    action_ref = jnp.argmax(logits_ref, axis=-1, keepdims=True)
    chosen_ref = jnp.take_along_axis(logp_ref, action_ref, axis=-1)
    ent_ref = -jnp.sum(jnp.exp(logp_ref) * logp_ref, axis=-1).mean()

    assert jnp.allclose(value, value_ref, atol=1e-4, rtol=1e-4)
    assert jnp.array_equal(action, action_ref.astype(jnp.int32))
    assert jnp.allclose(action_log_probs, chosen_ref, atol=1e-4, rtol=1e-4)
    assert jnp.allclose(entropy_mean, ent_ref, atol=1e-4, rtol=1e-4)

    print("KERNEL_OK")
</pallas_src>

<mosaic_0001>
module attributes {stable_mosaic.version = 11 : i64} {
  func.func @_policy_head_kernel(%arg0: i32, %arg1: memref<8x32xbf16, #tpu.memory_space<vmem>>, %arg2: memref<32x5xbf16, #tpu.memory_space<vmem>>, %arg3: memref<1x5xf32, #tpu.memory_space<vmem>>, %arg4: memref<8x8xf32, #tpu.memory_space<vmem>>) attributes {dimension_semantics = [#tpu.dimension_semantics<parallel>], iteration_bounds = array<i64: 1>, scalar_prefetch = 0 : i64, scratch_operands = 0 : i64, tpu.core_type = #tpu.core_type<tc>, window_params = [{transform_indices = @transform_0, window_bounds = array<i64: 8, 32>}, {pipeline_mode = #tpu.pipeline_mode<synchronous>, transform_indices = @transform_1, window_bounds = array<i64: 32, 5>}, {pipeline_mode = #tpu.pipeline_mode<synchronous>, transform_indices = @transform_2, window_bounds = array<i64: 1, 5>}, {transform_indices = @transform_3, window_bounds = array<i64: 8, 8>}]} {
    %c0 = arith.constant 0 : index
    %c0_0 = arith.constant 0 : index
    %0 = vector.load %arg1[%c0, %c0_0] : memref<8x32xbf16, #tpu.memory_space<vmem>>, vector<8x32xbf16>
    %c0_1 = arith.constant 0 : index
    %c0_2 = arith.constant 0 : index
    %1 = vector.load %arg2[%c0_1, %c0_2] : memref<32x5xbf16, #tpu.memory_space<vmem>>, vector<32x5xbf16>
    %cst = arith.constant dense<0.000000e+00> : vector<8x5xf32>
    %2 = tpu.matmul %0, %1, %cst {dimension_numbers = #tpu.dot_dimension_numbers<[1], [0], [0], [1], [0, 0, 1, 1], [], []>} : vector<8x32xbf16>, vector<32x5xbf16>, vector<8x5xf32> -> vector<8x5xf32>
    %c0_3 = arith.constant 0 : index
    %c0_4 = arith.constant 0 : index
    %3 = vector.load %arg3[%c0_3, %c0_4] : memref<1x5xf32, #tpu.memory_space<vmem>>, vector<1x5xf32>
    %4 = vector.broadcast %3 : vector<1x5xf32> to vector<8x5xf32>
    %5 = arith.addf %2, %4 : vector<8x5xf32>
    %6 = vector.extract_strided_slice %5 {offsets = [0, 0], sizes = [8, 4], strides = [1, 1]} : vector<8x5xf32> to vector<8x4xf32>
    %7 = vector.extract_strided_slice %5 {offsets = [0, 4], sizes = [8, 1], strides = [1, 1]} : vector<8x5xf32> to vector<8x1xf32>
    %cst_5 = arith.constant dense<0xFF800000> : vector<8xf32>
    %8 = vector.multi_reduction <maximumf>, %6, %cst_5 [1] : vector<8x4xf32> to vector<8xf32>
    %9 = vector.shape_cast %8 : vector<8xf32> to vector<8x1xf32>
    %10 = vector.broadcast %9 : vector<8x1xf32> to vector<8x4xf32>
    %11 = arith.subf %6, %10 : vector<8x4xf32>
    %12 = math.exp %11 : vector<8x4xf32>
    %cst_6 = arith.constant dense<0.000000e+00> : vector<8xf32>
    %13 = vector.multi_reduction <add>, %12, %cst_6 [1] : vector<8x4xf32> to vector<8xf32>
    %14 = vector.shape_cast %13 : vector<8xf32> to vector<8x1xf32>
    %15 = math.log %14 : vector<8x1xf32>
    %16 = tpu.iota {dimensions = array<i32: 1>} : vector<8x4xi32>
    %17 = vector.broadcast %9 : vector<8x1xf32> to vector<8x4xf32>
    %18 = arith.cmpf oeq, %6, %17 : vector<8x4xf32>
    %c4_i32 = arith.constant 4 : i32
    %19 = vector.broadcast %c4_i32 : i32 to vector<8x4xi32>
    %20 = arith.select %18, %16, %19 : vector<8x4xi1>, vector<8x4xi32>
    %cst_7 = arith.constant dense<2147483647> : vector<8xi32>
    %21 = vector.multi_reduction <minsi>, %20, %cst_7 [1] : vector<8x4xi32> to vector<8xi32>
    %22 = vector.shape_cast %21 : vector<8xi32> to vector<8x1xi32>
    %23 = vector.broadcast %22 : vector<8x1xi32> to vector<8x4xi32>
    %24 = arith.cmpi eq, %16, %23 : vector<8x4xi32>
    %cst_8 = arith.constant 0.000000e+00 : f32
    %25 = vector.broadcast %cst_8 : f32 to vector<8x4xf32>
    %26 = arith.select %24, %11, %25 : vector<8x4xi1>, vector<8x4xf32>
    %cst_9 = arith.constant dense<0.000000e+00> : vector<8xf32>
    %27 = vector.multi_reduction <add>, %26, %cst_9 [1] : vector<8x4xf32> to vector<8xf32>
    %28 = vector.shape_cast %27 : vector<8xf32> to vector<8x1xf32>
    %29 = arith.subf %28, %15 : vector<8x1xf32>
    %30 = arith.mulf %12, %11 : vector<8x4xf32>
    %cst_10 = arith.constant dense<0.000000e+00> : vector<8xf32>
    %31 = vector.multi_reduction <add>, %30, %cst_10 [1] : vector<8x4xf32> to vector<8xf32>
    %32 = vector.shape_cast %31 : vector<8xf32> to vector<8x1xf32>
    %33 = arith.divf %32, %14 : vector<8x1xf32>
    %34 = arith.subf %15, %33 : vector<8x1xf32>
    %35 = arith.sitofp %22 : vector<8x1xi32> to vector<8x1xf32>
    %36 = tpu.iota {dimensions = array<i32: 1>} : vector<8x8xi32>
    %c0_i32 = arith.constant 0 : i32
    %37 = vector.broadcast %c0_i32 : i32 to vector<8x8xi32>
    %38 = arith.cmpi eq, %36, %37 : vector<8x8xi32>
    %c1_i32 = arith.constant 1 : i32
    %39 = vector.broadcast %c1_i32 : i32 to vector<8x8xi32>
    %40 = arith.cmpi eq, %36, %39 : vector<8x8xi32>
    %c2_i32 = arith.constant 2 : i32
    %41 = vector.broadcast %c2_i32 : i32 to vector<8x8xi32>
    %42 = arith.cmpi eq, %36, %41 : vector<8x8xi32>
    %c3_i32 = arith.constant 3 : i32
    %43 = vector.broadcast %c3_i32 : i32 to vector<8x8xi32>
    %44 = arith.cmpi eq, %36, %43 : vector<8x8xi32>
    %cst_11 = arith.constant 0.000000e+00 : f32
    %45 = vector.shape_cast %35 : vector<8x1xf32> to vector<8x1xf32>
    %46 = vector.broadcast %45 : vector<8x1xf32> to vector<8x8xf32>
    %47 = vector.broadcast %cst_11 : f32 to vector<8x8xf32>
    %48 = arith.select %44, %46, %47 : vector<8x8xi1>, vector<8x8xf32>
    %49 = vector.shape_cast %34 : vector<8x1xf32> to vector<8x1xf32>
    %50 = vector.broadcast %49 : vector<8x1xf32> to vector<8x8xf32>
    %51 = arith.select %42, %50, %48 : vector<8x8xi1>, vector<8x8xf32>
    %52 = vector.shape_cast %29 : vector<8x1xf32> to vector<8x1xf32>
    %53 = vector.broadcast %52 : vector<8x1xf32> to vector<8x8xf32>
    %54 = arith.select %40, %53, %51 : vector<8x8xi1>, vector<8x8xf32>
    %55 = vector.shape_cast %7 : vector<8x1xf32> to vector<8x1xf32>
    %56 = vector.broadcast %55 : vector<8x1xf32> to vector<8x8xf32>
    %57 = arith.select %38, %56, %54 : vector<8x8xi1>, vector<8x8xf32>
    %c0_12 = arith.constant 0 : index
    %c0_13 = arith.constant 0 : index
    %58 = vector.load %arg4[%c0_12, %c0_13] : memref<8x8xf32, #tpu.memory_space<vmem>>, vector<8x8xf32>
    tpu.vector_store %arg4[%c0_12, %c0_13], %57 {strides = array<i32>} : memref<8x8xf32, #tpu.memory_space<vmem>>, vector<8x8xf32>,
    return
  }
  func.func @transform_0(%arg0: i32) -> (i32, i32) {
    %c0_i32 = arith.constant 0 : i32
    %c0_i32_0 = arith.constant 0 : i32
    return %arg0, %c0_i32 : i32, i32
  }
  func.func @transform_1(%arg0: i32) -> (i32, i32) {
    %c0_i32 = arith.constant 0 : i32
    %c0_i32_0 = arith.constant 0 : i32
    %c0_i32_1 = arith.constant 0 : i32
    return %c0_i32, %c0_i32_0 : i32, i32
  }
  func.func @transform_2(%arg0: i32) -> (i32, i32) {
    %c0_i32 = arith.constant 0 : i32
    %c0_i32_0 = arith.constant 0 : i32
    %c0_i32_1 = arith.constant 0 : i32
    return %c0_i32, %c0_i32_0 : i32, i32
  }
  func.func @transform_3(%arg0: i32) -> (i32, i32) {
    %c0_i32 = arith.constant 0 : i32
    %c0_i32_0 = arith.constant 0 : i32
    return %arg0, %c0_i32 : i32, i32
  }
}

</mosaic_0001>

<llo_original>
// kernel: tpu_custom_call.1
$region0: #{tpu_custom_call.1}
  #allocation0 [shape = 'u32[]', space=smem, size = 0x4, offset = 0x4, fixed_abs, tag = 'smem constant byte address 0x4 - core index']
  #allocation1 [shape = 'u32[144,128]{1,0:T(1,128)}', space=vmem, size = 0x12000, scoped, tag = 'internal scratch']
  %s0 = inlined_call_operand.vmem [shape: bf16[2,32], index: 0, kind: input, shape index: {}]
  %s1 = inlined_call_operand.vmem [shape: bf16[32,5], index: 1, kind: input, shape index: {}]
  %s2 = inlined_call_operand.vmem [shape: f32[1,5], index: 2, kind: input, shape index: {}]
  %s3 = inlined_call_operand.hbm [shape: f32[2,8], index: 3, kind: output, shape index: {}]
  %s4 = sld [smem:[#allocation0]]
  $region22: #{tpu_custom_call.1} parent=0
    _
  %s6 = ssub.s32 1, %s4
  %s7 = scalar_select 0, %s6, %s4
  $region1: #{tpu_custom_call.1} parent=0
    #allocation2 [shape = 'u8[4096]{0}', space=vmem, size = 0x1000, scoped, tag = 'output window, operand 0, single buffered']
    #allocation3 [shape = 's32[1]{0}', space=sflag, size = 0x4, scoped, tag = 'scoped memory for tpu_custom_call.1']
    %8 = vsyncpa [#allocation3], 0
    // Predicated region
    $region2: #{tpu_custom_call.1} parent=1 // pred_check
      _
    $region3: #{tpu_custom_call.1} parent=1 // pred_check_branch
      %10 = sbr.rel (0) target = $region5
    $region4: #{tpu_custom_call.1} parent=1 // pred_region
      _
    $region5: #{tpu_custom_call.1} parent=1 // pred_fallthru
      _
    // Predicated region
    $region6: #{tpu_custom_call.1} parent=1 // pred_check
      _
    $region7: #{tpu_custom_call.1} parent=1 // pred_check_branch
      %12 = sbr.rel (0) target = $region9
    $region8: #{tpu_custom_call.1} parent=1 // pred_region
      _
    $region9: #{tpu_custom_call.1} parent=1 // pred_fallthru
      _
    // Predicated region
    $region10: #{tpu_custom_call.1} parent=1 // pred_check
      _
    $region11: #{tpu_custom_call.1} parent=1 // pred_check_branch
      %14 = sbr.rel (0) target = $region13
    $region12: #{tpu_custom_call.1} parent=1 // pred_region
      _
    $region13: #{tpu_custom_call.1} parent=1 // pred_fallthru
      _
    %v16 = vld [vmem:[%s0] sm:$0x1]
    %v17 = vld [vmem:[%s0 + $0x1] sm:$0x1]
    %v18 = vld [vmem:[%s0 + $0x2] sm:$0x1]
    %v19 = vld [vmem:[%s0 + $0x3] sm:$0x1]
    %v20 = vld [vmem:[%s1] sm:$0xf]
    %v21 = vld [vmem:[%s1 + $0x4] sm:$0xf]
    %v22 = vld [vmem:[%s1 + $0x8] sm:$0xf]
    %v23 = vld [vmem:[%s1 + $0xc] sm:$0xf]
    %v24 = vld [vmem:[%s2] sm:$0x1]
    %v26 = vlaneseq
    %v27 = vshrl.u32 %v26, 7
    %v28 = vsub.s32 0, %v27
    %v29 = vrot.slane %v24, %v28
    %v35 = vcombine.low %v16, %v17
    %v36 = vcombine.low %v18, %v19
    %v38 = vunpack.c.l.s4 1966171168
    %v39 = vunpack.c.0.s8 %v38
    %v40 = vlaneseq
    %v41 = vshrl.u32 %v40, 7
    %v42 = vsub.s32 %v39, %v41
    %v43 = vrot.slane %v35, %v42
    %v45 = vunpack.c.l.s4 1966171168
    %v46 = vunpack.c.0.s8 %v45
    %v47 = vlaneseq
    %v48 = vshrl.u32 %v47, 7
    %v49 = vsub.s32 %v46, %v48
    %v50 = vrot.slane %v36, %v49
    %v51 = vcombine.low %v43, %v50
    %v53 = vunpack.c.l.s4 1966171168
    %v54 = vunpack.c.0.s8 %v53
    %v55 = vlaneseq
    %v56 = vshrl.u32 %v55, 7
    %v57 = vsub.s32 %v54, %v56
    %v58 = vrot.slane %v51, %v57
    %v63 = vunpack.c.l.b16 %v20
    %v64 = vunpack.c.l.b16 %v21
    %v65 = vunpack.c.l.b16 %v22
    %v66 = vunpack.c.l.b16 %v23
    %v67 = vpack.c.b16 %v64, %v63
    %v68 = vpack.c.b16 %v66, %v65
    %vm71 = vcmask 261120
    %v73 = vsel %vm71, %v58, 0
    %75 = vmatprep.subr.bf16.mxu0 0
    %76 = vmatpush1.bf16.msra.mxu0 0
    %77 = vmatprep.subr.bf16.mxu0 0
    %78 = vmatpush1.bf16.msra.mxu0 0
    %79 = vmatprep.subr.bf16.mxu0 0
    %80 = vmatpush1.bf16.msra.mxu0 0
    %81 = vmatprep.subr.bf16.mxu0 0
    %82 = vmatpush1.bf16.msra.mxu0 0
    %83 = vmatprep.subr.bf16.mxu0 0
    %84 = vmatpush1.bf16.msra.mxu0 0
    %85 = vmatprep.subr.bf16.mxu0 0
    %86 = vmatpush1.bf16.msra.mxu0 0
    %87 = vmatprep.subr.bf16.mxu0 0
    %88 = vmatpush1.bf16.msra.mxu0 %v68
    %89 = vmatprep.subr.bf16.mxu0 0
    %90 = vmatpush1.bf16.msra.mxu0 %v67
    %91 = vmatprep.subr.bf16.mxu0 0
    %92 = vmatpush2.bf16.msra.mxu0 0
    %93 = vmatprep.subr.bf16.mxu0 0
    %94 = vmatpush2.bf16.msra.mxu0 0
    %95 = vmatprep.subr.bf16.mxu0 0
    %96 = vmatpush2.bf16.msra.mxu0 0
    %97 = vmatprep.subr.bf16.mxu0 0
    %98 = vmatpush2.bf16.msra.mxu0 0
    %99 = vmatprep.subr.bf16.mxu0 0
    %100 = vmatpush2.bf16.msra.mxu0 0
    %101 = vmatprep.subr.bf16.mxu0 0
    %102 = vmatpush2.bf16.msra.mxu0 0
    %103 = vmatprep.subr.bf16.mxu0 0
    %104 = vmatpush2.bf16.msra.mxu0 0
    %105 = vmatprep.subr.bf16.mxu0 0
    %106 = vmatpush2.bf16.msra.mxu0 0
    %107 = vmatprep.mubr.bf16.mxu0 0
    %108 = vmatmul.mubr.bf16.gmra.mxu0 %v73
    %v109 = vpop.f32.mrf.mxu0
    %v110 = vadd.f32 %v29, %v109
    %v111 = vpop.f32.mrf.mxu0
    %v112 = vpop.f32.mrf.mxu0
    %v113 = vpop.f32.mrf.mxu0
    %114 = vdwg.mxu0
    %vm115 = vcmask 31744
    %v116 = vsel %vm115, %v110, -inf
    %117 = vmax.xlane.f32.xlu0 %v116
    %v118 = vpop.xlane.xlu0 %117
    %v119 = vsub.f32 %v110, %v118
    %v120 = vmul.f32 %v119, 1.442695
    %v121 = vpow.pop %v120
    %v122 = vsel %vm115, %v121, 0.0
    %123 = vadd.xlane.f32.xlu0 %v122
    %v124 = vpop.xlane.xlu0 %123
    %v125 = vlog2.pop %v124
    %v126 = vmul.f32 %v125, 0.6931472
    %v127 = vlaneseq
    %v128 = vand.u32 %v127, 127
    %vm129 = vcmp.eq.f32.partialorder %v110, %v118
    %v130 = vsel %vm129, %v128, 4
    %v131 = vsel %vm115, %v130, 2147483647
    %v132 = vand.u32 %v131, 65535
    %v133 = vshra.s32 %v131, 16
    %v134 = vcvt.s32.f32 %v132
    %v135 = vcvt.s32.f32 %v133
    %136 = vmin.xlane.f32.xlu0 %v135
    %v137 = vpop.xlane.xlu0 %136
    %vm138 = vcmp.eq.f32.partialorder %v135, %v137
    %v139 = vsel %vm138, %v134, inf
    %140 = vmin.xlane.f32.xlu0 %v139
    %v141 = vpop.xlane.xlu0 %140
    %v142 = vcvt.f32.s32 %v141
    %v143 = vcvt.f32.s32 %v137
    %v144 = vshll.u32 %v143, 16
    %v145 = vadd.s32 %v144, %v142
    %vm146 = vcmp.eq.s32.totalorder %v128, %v145
    %v147 = vsel %vm146, %v119, 0.0
    %v148 = vsel %vm115, %v147, 0.0
    %149 = vadd.xlane.f32.xlu0 %v148
    %v150 = vpop.xlane.xlu0 %149
    %v151 = vsub.f32 %v150, %v126
    %v152 = vmul.f32 %v121, %v119
    %v153 = vsel %vm115, %v152, 0.0
    %154 = vadd.xlane.f32.xlu0 %v153
    %v155 = vpop.xlane.xlu0 %154
    %v156 = vrcp.pop %v124
    %v157 = vmul.f32 %v155, %v156
    %v158 = vsub.f32 %v126, %v157
    %v159 = vcvt.s32.f32 %v145
    %vm160 = vcmp.eq.s32.totalorder %v128, 0
    %vm161 = vcmp.eq.s32.totalorder %v128, 1
    %vm162 = vcmp.eq.s32.totalorder %v128, 2
    %vm163 = vcmp.eq.s32.totalorder %v128, 3
    %v164 = vsel %vm163, %v159, 0.0
    %v165 = vsel %vm162, %v158, %v164
    %v166 = vsel %vm161, %v151, %v165
    %168 = vset.pattern.permute.xlu0 4
    %169 = vperm.xlu0 %168, %v110
    %v170 = vpop.permute.xlu0 %169
    %v172 = vsel %vm160, %v170, %v166
    %vm173 = vcmask 64512
    %174 = vst.msk [vmem:[#allocation2] sm:$0xff] %vm173, %v172
    // Predicated region
    $region14: #{tpu_custom_call.1} parent=1 // pred_check
      _
    $region15: #{tpu_custom_call.1} parent=1 // pred_check_branch
      %176 = sbr.rel (0) target = $region17
    $region16: #{tpu_custom_call.1} parent=1 // pred_region
      %s178 = ssub.s32 128, 32
      %179 = vsyncadd [#allocation3], %s178
      %s180 = sshll.u32 [#allocation2], 4
      %s181 = int_to_ptr.vmem [resolvable:$true] %s180
      %186 = dma.vmem_to_hbm [thread:$0]  %s181, 32, %s3, [#allocation3], 32, 32, 2
    $region17: #{tpu_custom_call.1} parent=1 // pred_fallthru
      _
    // Predicated region
    $region18: #{tpu_custom_call.1} parent=1 // pred_check
      _
    $region19: #{tpu_custom_call.1} parent=1 // pred_check_branch
      %188 = sbr.rel (0) target = $region21
    $region20: #{tpu_custom_call.1} parent=1 // pred_region
      %189 = dma.done [#allocation3], 128
    $region21: #{tpu_custom_call.1} parent=1 // pred_fallthru
      _
    %190 = vsyncpa [#allocation3], 1

</llo_original>
